<compile_context>
chip_gen: v7x
topology: tpu7x:2x2x1
jax: 0.10.0
libtpu: 0.0.40
codegen_flags: <defaults>
</compile_context>

<pallas_src>
import math

import jax
import jax.numpy as jnp
from jax import lax
from jax.experimental import pallas as pl
from jax.experimental.pallas import tpu as pltpu

# ---------------- synthetic config ----------------
HIDDEN = 64
NUM_HEADS = 4
HEAD_DIM = HIDDEN // NUM_HEADS
HASHCODE_LEN = 9          # YOSO hash-code length (tau)
_EPS_SQ = 1e-24           # (1e-12)^2, matches F.normalize(p=2, eps=1e-12)

# arccos(a) ~= poly(a) * sqrt(1 - a) on [0, 1]   (A&S 4.4.46 style, |err| ~ 1e-7).
# Coefficients are pre-divided by pi so the kernel gets acos(a)/pi directly.
_ACOS_POLY_OVER_PI = tuple(
    c / math.pi
    for c in (-0.0012624911, 0.0066700901, -0.0170881256, 0.0308918810,
              -0.0501743046, 0.0889789874, -0.2145988016, 1.5707963050))


def _int_pow(x, n):
    # x ** n (n >= 1) via square-and-multiply, unrolled at trace time.
    acc = None
    while n:
        if n & 1:
            acc = x if acc is None else acc * x
        n >>= 1
        if n:
            x = x * x
    return acc


# ---------------- fused projection + YOSO attention kernel ----------------
def _make_yoso_kernel(R):
    """R = batch rows packed side-by-side on the lane axis per grid step."""
    H, NH, D = HIDDEN, NUM_HEADS, HEAD_DIM
    RH = R * H

    def kernel(x_ref, w_ref, b_ref, mw_ref, mkv_ref, mdd_ref, o_ref):
        f32 = jnp.float32
        x = x_ref[0]                # (S, R*H)  bf16, R batch rows packed on lanes
        mask_w = mw_ref[0]          # (S, R*H)  f32, mask_w[t, c] = mask[batch(c), t]
        m_kv = mkv_ref[...]         # (R*NH*S, R*H)  0/1 (batch,head)-block mask
        m_dd = mdd_ref[...]         # (R*H, R*H)     0/1 per-(batch,head) block-ones

        # Fused, batch-block-diagonal QKV projection: (S,RH)@(RH,3RH) on the MXU,
        # bf16 operands, f32 accumulation.  Slices below fall on 128-lane tiles.
        qkv = jnp.dot(x, w_ref[...], preferred_element_type=f32) + b_ref[...]
        q = qkv[:, 0:RH]
        k = qkv[:, RH:2 * RH]
        v = qkv[:, 2 * RH:3 * RH]

        # Per-(batch, head) L2 normalization of Q and K: the block-ones matmul
        # broadcasts each head's sum-of-squares across its D lanes (stays
        # lane-dense; rsqrt runs on the EUP slot).
        q_ss = jnp.dot(q * q, m_dd, preferred_element_type=f32)
        k_ss = jnp.dot(k * k, m_dd, preferred_element_type=f32)
        qn = q * lax.rsqrt(jnp.maximum(q_ss, f32(_EPS_SQ)))
        kn = k * lax.rsqrt(jnp.maximum(k_ss, f32(_EPS_SQ)))

        # Key mask hoisted off the S^2 score slab: mask V rows instead
        # (exactly equal for 0/1 masks).
        vm = v * mask_w

        # Block-diagonal K / V slabs: one lane-dense score matmul and one PV
        # matmul for ALL (batch, head) pairs of this step.
        kbd = jnp.concatenate([kn] * (R * NH), axis=0) * m_kv   # (R*NH*S, R*H)
        vbd = jnp.concatenate([vm] * (R * NH), axis=0) * m_kv   # (R*NH*S, R*H)

        # scores[i, (b,h,j)] = <qn_i, kn_j> restricted to head h of batch row b
        s = lax.dot_general(qn, kbd, (((1,), (1,)), ((), ())),
                            preferred_element_type=f32)         # (S, R*NH*S)

        # YOSO collision probability (1 - acos(s)/pi) ** hashcode_len.
        # a = min(|s|,1) also clamps |s|>1 from rounding (torch.acos would NaN).
        a = jnp.minimum(jnp.abs(s), f32(1.0))
        p = f32(_ACOS_POLY_OVER_PI[0])
        for c in _ACOS_POLY_OVER_PI[1:]:
            p = p * a + f32(c)
        t = p * jnp.sqrt(f32(1.0) - a)                  # acos(|s|)/pi, 1-a >= 0
        prob = jnp.where(s < f32(0.0), t, f32(1.0) - t)
        e = _int_pow(prob, HASHCODE_LEN)                # prob ** 9, 4 multiplies

        # PV: result is already the combined-heads (S, R*H) slab.
        out = jnp.dot(e, vbd, preferred_element_type=f32)

        # Per-(batch, head) L2 normalization, then the query mask
        # (for 0/1 masks equivalent to masking the score rows before PV).
        o_ss = jnp.dot(out * out, m_dd, preferred_element_type=f32)
        o_ref[0] = out * lax.rsqrt(jnp.maximum(o_ss, f32(_EPS_SQ))) * mask_w

    return kernel


# ---------------- wrapper ----------------
def yoso_attention_fused(x, params, mask):
    # x: (B, S, H) f32, mask: (B, S) f32 (1.0 = valid, 0.0 = padding)
    B, S, H = x.shape
    assert H == HIDDEN
    NH, D = NUM_HEADS, HEAD_DIM
    R = 2 if B % 2 == 0 else 1          # batch rows per grid step (lane-dense output)
    G = B // R
    RH, RNS = R * H, R * NH * S
    f32 = jnp.float32

    # Batch-block-diagonal fused QKV weight (RH, 3RH): columns [Q | K | V], each a
    # kron(I_R, W^T) so the projection output lands directly in the packed "wide"
    # layout (R batch rows side by side on the lane axis).
    eye = jnp.eye(R, dtype=f32)
    w_big = jnp.concatenate([jnp.kron(eye, params["wq_t"]),
                             jnp.kron(eye, params["wk_t"]),
                             jnp.kron(eye, params["wv_t"])], axis=1)
    b_big = jnp.concatenate([jnp.tile(params["bq"], R),
                             jnp.tile(params["bk"], R),
                             jnp.tile(params["bv"], R)]).reshape(1, 3 * RH)

    # Pack (B, S, H) -> (B//R, S, R*H); same wide layout for the token mask, which
    # serves as both key mask (on V rows) and query mask (on output rows).
    xw = x.reshape(G, R, S, H).transpose(0, 2, 1, 3).reshape(G, S, RH)
    mw = jnp.repeat(mask.reshape(G, R, S).transpose(0, 2, 1), H, axis=2)  # (G,S,RH)

    # 0/1 structure masks (shape-only constants).
    r_i = jnp.arange(RNS)[:, None]
    c_i = jnp.arange(RH)[None, :]
    m_kv = ((r_i // (NH * S) == c_i // H)
            & ((r_i % (NH * S)) // S == (c_i % H) // D)).astype(f32)      # (RNS, RH)
    r_j = jnp.arange(RH)[:, None]
    m_dd = (r_j // D == c_i // D).astype(f32)                             # (RH, RH)

    out = pl.pallas_call(
        _make_yoso_kernel(R),
        grid=(G,),
        in_specs=[
            pl.BlockSpec((1, S, RH), lambda g: (g, 0, 0)),       # x (wide, bf16)
            pl.BlockSpec((RH, 3 * RH), lambda g: (0, 0)),        # fused weight (bf16)
            pl.BlockSpec((1, 3 * RH), lambda g: (0, 0)),         # fused bias
            pl.BlockSpec((1, S, RH), lambda g: (g, 0, 0)),       # wide token mask
            pl.BlockSpec((RNS, RH), lambda g: (0, 0)),           # K/V block-diag mask
            pl.BlockSpec((RH, RH), lambda g: (0, 0)),            # per-head block-ones
        ],
        out_specs=pl.BlockSpec((1, S, RH), lambda g: (g, 0, 0)),
        out_shape=jax.ShapeDtypeStruct((G, S, RH), f32),
        compiler_params=pltpu.CompilerParams(
            dimension_semantics=("parallel",)),
    )(xw.astype(jnp.bfloat16), w_big.astype(jnp.bfloat16), b_big, mw, m_kv, m_dd)

    # Unpack (B//R, S, R*H) -> (B, S, H).
    return out.reshape(G, S, R, H).transpose(0, 2, 1, 3).reshape(B, S, H)


# ---------------- full Attention forward ----------------
def attention_forward(params, x, mask):
    ctx = yoso_attention_fused(x.astype(jnp.float32), params, mask.astype(jnp.float32))
    return ctx.astype(x.dtype)


# ---------------- deterministic parameter init ----------------
def init_params(key):
    kq, kk, kv, kbq, kbk, kbv = jax.random.split(key, 6)
    scale = 1.0 / math.sqrt(HIDDEN)
    # nn.Linear weights are (out, in); store the transposed (in, out) form.
    wq = scale * jax.random.normal(kq, (HIDDEN, HIDDEN), jnp.float32)
    wk = scale * jax.random.normal(kk, (HIDDEN, HIDDEN), jnp.float32)
    wv = scale * jax.random.normal(kv, (HIDDEN, HIDDEN), jnp.float32)
    bq = 0.01 * jax.random.normal(kbq, (HIDDEN,), jnp.float32)
    bk = 0.01 * jax.random.normal(kbk, (HIDDEN,), jnp.float32)
    bv = 0.01 * jax.random.normal(kbv, (HIDDEN,), jnp.float32)
    return {"wq_t": wq.T, "wk_t": wk.T, "wv_t": wv.T, "bq": bq, "bk": bk, "bv": bv}


if __name__ == "__main__":
    key = jax.random.PRNGKey(0)
    kp, kx = jax.random.split(key)

    B, S = 2, 16
    params = init_params(kp)
    x = jax.random.normal(kx, (B, S, HIDDEN), dtype=jnp.float32)
    # last 3 tokens of each sequence are padding
    mask = jnp.ones((B, S), dtype=jnp.float32).at[:, S - 3:].set(0.0)

    out = jax.jit(attention_forward)(params, x, mask)
    jax.block_until_ready(out)
    assert out.shape == (B, S, HIDDEN) and out.dtype == x.dtype
    assert bool(jnp.all(jnp.isfinite(out)))
    print("KERNEL_OK")
</pallas_src>

<mosaic_0001>
module attributes {stable_mosaic.version = 11 : i64} {
  func.func @kernel(%arg0: i32, %arg1: memref<1x16x128xbf16, #tpu.memory_space<vmem>>, %arg2: memref<128x384xbf16, #tpu.memory_space<vmem>>, %arg3: memref<1x384xf32, #tpu.memory_space<vmem>>, %arg4: memref<1x16x128xf32, #tpu.memory_space<vmem>>, %arg5: memref<128x128xf32, #tpu.memory_space<vmem>>, %arg6: memref<128x128xf32, #tpu.memory_space<vmem>>, %arg7: memref<1x16x128xf32, #tpu.memory_space<vmem>>) attributes {dimension_semantics = [#tpu.dimension_semantics<parallel>], iteration_bounds = array<i64: 1>, scalar_prefetch = 0 : i64, scratch_operands = 0 : i64, tpu.core_type = #tpu.core_type<tc>, window_params = [{transform_indices = @transform_0, window_bounds = array<i64: 1, 16, 128>}, {pipeline_mode = #tpu.pipeline_mode<synchronous>, transform_indices = @transform_1, window_bounds = array<i64: 128, 384>}, {pipeline_mode = #tpu.pipeline_mode<synchronous>, transform_indices = @transform_2, window_bounds = array<i64: 1, 384>}, {transform_indices = @transform_3, window_bounds = array<i64: 1, 16, 128>}, {pipeline_mode = #tpu.pipeline_mode<synchronous>, transform_indices = @transform_4, window_bounds = array<i64: 128, 128>}, {pipeline_mode = #tpu.pipeline_mode<synchronous>, transform_indices = @transform_5, window_bounds = array<i64: 128, 128>}, {transform_indices = @transform_6, window_bounds = array<i64: 1, 16, 128>}]} {
    %c0 = arith.constant 0 : index
    %c0_0 = arith.constant 0 : index
    %c0_1 = arith.constant 0 : index
    %0 = vector.load %arg1[%c0, %c0_0, %c0_1] : memref<1x16x128xbf16, #tpu.memory_space<vmem>>, vector<1x16x128xbf16>
    %1 = vector.shape_cast %0 : vector<1x16x128xbf16> to vector<16x128xbf16>
    %c0_2 = arith.constant 0 : index
    %c0_3 = arith.constant 0 : index
    %c0_4 = arith.constant 0 : index
    %2 = vector.load %arg4[%c0_2, %c0_3, %c0_4] : memref<1x16x128xf32, #tpu.memory_space<vmem>>, vector<1x16x128xf32>
    %3 = vector.shape_cast %2 : vector<1x16x128xf32> to vector<16x128xf32>
    %c0_5 = arith.constant 0 : index
    %c0_6 = arith.constant 0 : index
    %4 = vector.load %arg5[%c0_5, %c0_6] : memref<128x128xf32, #tpu.memory_space<vmem>>, vector<128x128xf32>
    %c0_7 = arith.constant 0 : index
    %c0_8 = arith.constant 0 : index
    %5 = vector.load %arg6[%c0_7, %c0_8] : memref<128x128xf32, #tpu.memory_space<vmem>>, vector<128x128xf32>
    %c0_9 = arith.constant 0 : index
    %c0_10 = arith.constant 0 : index
    %6 = vector.load %arg2[%c0_9, %c0_10] : memref<128x384xbf16, #tpu.memory_space<vmem>>, vector<128x384xbf16>
    %cst = arith.constant dense<0.000000e+00> : vector<16x384xf32>
    %7 = tpu.matmul %1, %6, %cst {dimension_numbers = #tpu.dot_dimension_numbers<[1], [0], [0], [1], [0, 0, 1, 1], [], []>} : vector<16x128xbf16>, vector<128x384xbf16>, vector<16x384xf32> -> vector<16x384xf32>
    %c0_11 = arith.constant 0 : index
    %c0_12 = arith.constant 0 : index
    %8 = vector.load %arg3[%c0_11, %c0_12] : memref<1x384xf32, #tpu.memory_space<vmem>>, vector<1x384xf32>
    %9 = vector.broadcast %8 : vector<1x384xf32> to vector<16x384xf32>
    %10 = arith.addf %7, %9 : vector<16x384xf32>
    %11 = vector.extract_strided_slice %10 {offsets = [0, 0], sizes = [16, 128], strides = [1, 1]} : vector<16x384xf32> to vector<16x128xf32>
    %12 = vector.extract_strided_slice %10 {offsets = [0, 128], sizes = [16, 128], strides = [1, 1]} : vector<16x384xf32> to vector<16x128xf32>
    %13 = vector.extract_strided_slice %10 {offsets = [0, 256], sizes = [16, 128], strides = [1, 1]} : vector<16x384xf32> to vector<16x128xf32>
    %14 = arith.mulf %11, %11 : vector<16x128xf32>
    %cst_13 = arith.constant dense<0.000000e+00> : vector<16x128xf32>
    %15 = tpu.matmul %14, %5, %cst_13 {dimension_numbers = #tpu.dot_dimension_numbers<[1], [0], [0], [1], [0, 0, 1, 1], [], []>} : vector<16x128xf32>, vector<128x128xf32>, vector<16x128xf32> -> vector<16x128xf32>
    %16 = arith.mulf %12, %12 : vector<16x128xf32>
    %cst_14 = arith.constant dense<0.000000e+00> : vector<16x128xf32>
    %17 = tpu.matmul %16, %5, %cst_14 {dimension_numbers = #tpu.dot_dimension_numbers<[1], [0], [0], [1], [0, 0, 1, 1], [], []>} : vector<16x128xf32>, vector<128x128xf32>, vector<16x128xf32> -> vector<16x128xf32>
    %cst_15 = arith.constant 1.000000e-24 : f32
    %18 = vector.broadcast %cst_15 : f32 to vector<16x128xf32>
    %19 = arith.maximumf %15, %18 : vector<16x128xf32>
    %20 = math.rsqrt %19 : vector<16x128xf32>
    %21 = arith.mulf %11, %20 : vector<16x128xf32>
    %cst_16 = arith.constant 1.000000e-24 : f32
    %22 = vector.broadcast %cst_16 : f32 to vector<16x128xf32>
    %23 = arith.maximumf %17, %22 : vector<16x128xf32>
    %24 = math.rsqrt %23 : vector<16x128xf32>
    %25 = arith.mulf %12, %24 : vector<16x128xf32>
    %26 = arith.mulf %13, %3 : vector<16x128xf32>
    %27 = tpu.concatenate %25, %25, %25, %25, %25, %25, %25, %25 in 0 : vector<16x128xf32>, vector<16x128xf32>, vector<16x128xf32>, vector<16x128xf32>, vector<16x128xf32>, vector<16x128xf32>, vector<16x128xf32>, vector<16x128xf32> -> vector<128x128xf32>
    %28 = arith.mulf %27, %4 : vector<128x128xf32>
    %29 = tpu.concatenate %26, %26, %26, %26, %26, %26, %26, %26 in 0 : vector<16x128xf32>, vector<16x128xf32>, vector<16x128xf32>, vector<16x128xf32>, vector<16x128xf32>, vector<16x128xf32>, vector<16x128xf32>, vector<16x128xf32> -> vector<128x128xf32>
    %30 = arith.mulf %29, %4 : vector<128x128xf32>
    %cst_17 = arith.constant dense<0.000000e+00> : vector<16x128xf32>
    %31 = tpu.matmul %21, %28, %cst_17 {dimension_numbers = #tpu.dot_dimension_numbers<[1], [1], [0], [0], [0, 0, 1, 0], [], []>} : vector<16x128xf32>, vector<128x128xf32>, vector<16x128xf32> -> vector<16x128xf32>
    %32 = math.absf %31 : vector<16x128xf32>
    %cst_18 = arith.constant 1.000000e+00 : f32
    %33 = vector.broadcast %cst_18 : f32 to vector<16x128xf32>
    %34 = arith.minimumf %32, %33 : vector<16x128xf32>
    %cst_19 = arith.constant -4.01863392E-4 : f32
    %35 = vector.broadcast %cst_19 : f32 to vector<16x128xf32>
    %36 = arith.mulf %35, %34 : vector<16x128xf32>
    %cst_20 = arith.constant 0.00212315563 : f32
    %37 = vector.broadcast %cst_20 : f32 to vector<16x128xf32>
    %38 = arith.addf %36, %37 : vector<16x128xf32>
    %39 = arith.mulf %38, %34 : vector<16x128xf32>
    %cst_21 = arith.constant -0.00543931918 : f32
    %40 = vector.broadcast %cst_21 : f32 to vector<16x128xf32>
    %41 = arith.addf %39, %40 : vector<16x128xf32>
    %42 = arith.mulf %41, %34 : vector<16x128xf32>
    %cst_22 = arith.constant 0.00983319152 : f32
    %43 = vector.broadcast %cst_22 : f32 to vector<16x128xf32>
    %44 = arith.addf %42, %43 : vector<16x128xf32>
    %45 = arith.mulf %44, %34 : vector<16x128xf32>
    %cst_23 = arith.constant -0.015970977 : f32
    %46 = vector.broadcast %cst_23 : f32 to vector<16x128xf32>
    %47 = arith.addf %45, %46 : vector<16x128xf32>
    %48 = arith.mulf %47, %34 : vector<16x128xf32>
    %cst_24 = arith.constant 0.0283228923 : f32
    %49 = vector.broadcast %cst_24 : f32 to vector<16x128xf32>
    %50 = arith.addf %48, %49 : vector<16x128xf32>
    %51 = arith.mulf %50, %34 : vector<16x128xf32>
    %cst_25 = arith.constant -0.0683089196 : f32
    %52 = vector.broadcast %cst_25 : f32 to vector<16x128xf32>
    %53 = arith.addf %51, %52 : vector<16x128xf32>
    %54 = arith.mulf %53, %34 : vector<16x128xf32>
    %cst_26 = arith.constant 5.000000e-01 : f32
    %55 = vector.broadcast %cst_26 : f32 to vector<16x128xf32>
    %56 = arith.addf %54, %55 : vector<16x128xf32>
    %cst_27 = arith.constant 1.000000e+00 : f32
    %57 = vector.broadcast %cst_27 : f32 to vector<16x128xf32>
    %58 = arith.subf %57, %34 : vector<16x128xf32>
    %59 = math.sqrt %58 : vector<16x128xf32>
    %60 = arith.mulf %56, %59 : vector<16x128xf32>
    %cst_28 = arith.constant 0.000000e+00 : f32
    %61 = vector.broadcast %cst_28 : f32 to vector<16x128xf32>
    %62 = arith.cmpf olt, %31, %61 : vector<16x128xf32>
    %cst_29 = arith.constant 1.000000e+00 : f32
    %63 = vector.broadcast %cst_29 : f32 to vector<16x128xf32>
    %64 = arith.subf %63, %60 : vector<16x128xf32>
    %65 = arith.select %62, %60, %64 : vector<16x128xi1>, vector<16x128xf32>
    %66 = arith.mulf %65, %65 : vector<16x128xf32>
    %67 = arith.mulf %66, %66 : vector<16x128xf32>
    %68 = arith.mulf %67, %67 : vector<16x128xf32>
    %69 = arith.mulf %65, %68 : vector<16x128xf32>
    %cst_30 = arith.constant dense<0.000000e+00> : vector<16x128xf32>
    %70 = tpu.matmul %69, %30, %cst_30 {dimension_numbers = #tpu.dot_dimension_numbers<[1], [0], [0], [1], [0, 0, 1, 1], [], []>} : vector<16x128xf32>, vector<128x128xf32>, vector<16x128xf32> -> vector<16x128xf32>
    %71 = arith.mulf %70, %70 : vector<16x128xf32>
    %cst_31 = arith.constant dense<0.000000e+00> : vector<16x128xf32>
    %72 = tpu.matmul %71, %5, %cst_31 {dimension_numbers = #tpu.dot_dimension_numbers<[1], [0], [0], [1], [0, 0, 1, 1], [], []>} : vector<16x128xf32>, vector<128x128xf32>, vector<16x128xf32> -> vector<16x128xf32>
    %cst_32 = arith.constant 1.000000e-24 : f32
    %73 = vector.broadcast %cst_32 : f32 to vector<16x128xf32>
    %74 = arith.maximumf %72, %73 : vector<16x128xf32>
    %75 = math.rsqrt %74 : vector<16x128xf32>
    %76 = arith.mulf %70, %75 : vector<16x128xf32>
    %77 = arith.mulf %76, %3 : vector<16x128xf32>
    %c0_33 = arith.constant 0 : index
    %c0_34 = arith.constant 0 : index
    %c0_35 = arith.constant 0 : index
    %78 = vector.load %arg7[%c0_33, %c0_34, %c0_35] : memref<1x16x128xf32, #tpu.memory_space<vmem>>, vector<1x16x128xf32>
    %79 = vector.shape_cast %78 : vector<1x16x128xf32> to vector<16x128xf32>
    %80 = vector.shape_cast %77 : vector<16x128xf32> to vector<1x16x128xf32>
    tpu.vector_store %arg7[%c0_33, %c0_34, %c0_35], %80 {strides = array<i32>} : memref<1x16x128xf32, #tpu.memory_space<vmem>>, vector<1x16x128xf32>,
    return
  }
  func.func @transform_0(%arg0: i32) -> (i32, i32, i32) {
    %c0_i32 = arith.constant 0 : i32
    %c0_i32_0 = arith.constant 0 : i32
    %c0_i32_1 = arith.constant 0 : i32
    return %arg0, %c0_i32, %c0_i32_0 : i32, i32, i32
  }
  func.func @transform_1(%arg0: i32) -> (i32, i32) {
    %c0_i32 = arith.constant 0 : i32
    %c0_i32_0 = arith.constant 0 : i32
    %c0_i32_1 = arith.constant 0 : i32
    return %c0_i32, %c0_i32_0 : i32, i32
  }
  func.func @transform_2(%arg0: i32) -> (i32, i32) {
    %c0_i32 = arith.constant 0 : i32
    %c0_i32_0 = arith.constant 0 : i32
    %c0_i32_1 = arith.constant 0 : i32
    return %c0_i32, %c0_i32_0 : i32, i32
  }
  func.func @transform_3(%arg0: i32) -> (i32, i32, i32) {
    %c0_i32 = arith.constant 0 : i32
    %c0_i32_0 = arith.constant 0 : i32
    %c0_i32_1 = arith.constant 0 : i32
    return %arg0, %c0_i32, %c0_i32_0 : i32, i32, i32
  }
  func.func @transform_4(%arg0: i32) -> (i32, i32) {
    %c0_i32 = arith.constant 0 : i32
    %c0_i32_0 = arith.constant 0 : i32
    %c0_i32_1 = arith.constant 0 : i32
    return %c0_i32, %c0_i32_0 : i32, i32
  }
  func.func @transform_5(%arg0: i32) -> (i32, i32) {
    %c0_i32 = arith.constant 0 : i32
    %c0_i32_0 = arith.constant 0 : i32
    %c0_i32_1 = arith.constant 0 : i32
    return %c0_i32, %c0_i32_0 : i32, i32
  }
  func.func @transform_6(%arg0: i32) -> (i32, i32, i32) {
    %c0_i32 = arith.constant 0 : i32
    %c0_i32_0 = arith.constant 0 : i32
    %c0_i32_1 = arith.constant 0 : i32
    return %arg0, %c0_i32, %c0_i32_0 : i32, i32, i32
  }
}

</mosaic_0001>

<llo_original>
// kernel: tile.28
$region0: #{tile.28}
  #allocation0 [shape = 's32[1]{0}', space=sflag, size = 0x4, scoped, tag = 'scoped memory for tile.28']
  %s0 = inlined_call_operand.vmem [shape: f32[64], index: 0, kind: input, shape index: {}]
  %s1 = inlined_call_operand.vmem [shape: f32[2,64], index: 1, kind: output, shape index: {}]
  // Predicated region
  $region2: #{tile.28} parent=0 // pred_check
    _
  $region3: #{tile.28} parent=0 // pred_check_branch
    %3 = sbr.rel (0) target = $region5
  $region4: #{tile.28} parent=0 // pred_region
    _
  $region5: #{tile.28} parent=0 // pred_fallthru
    _
  %v4 = vld [vmem:[%s0] ss:$0 sm:$0xff]
  %5 = vst [vmem:[%s1] sm:$0x3] %v4

// kernel: tile.29
$region0: #{tile.29}
  %s0 = inlined_call_operand.vmem [shape: f32[2,64], index: 0, kind: input, shape index: {}]
  %s1 = inlined_call_operand.vmem [shape: f32[128], index: 1, kind: output, shape index: {}]
  $region1: #{tile.29} parent=0
    #allocation0 [shape = 'u8[4096]{0}', space=vmem, size = 0x1000, scoped, tag = 'scoped mem for output reshape']
    #allocation1 [shape = 'u8[4096]{0}', space=vmem, size = 0x1000, scoped, tag = 'scoped mem for input reshape']
    %s3 = sshllo.u32 0, 2
    %v4 = vld [vmem:[%s0] sm:%s3]
    %5 = vst [vmem:[#allocation1] sm:%s3] %v4
    %v6 = vld [vmem:[#allocation1] sm:$0x1]
    %vm7 = vcmask 523264
    %8 = vst.msk [vmem:[#allocation0] sm:$0x1] %vm7, %v6
    %s9 = scalar_lea.vmem [#allocation1], 1
    %v10 = vld [vmem:[%s9] sm:$0x1]
    %11 = vrot.lane.b32.xlu0 %v10, 64
    %v12 = vpop.permute.xlu0 %11
    %vm13 = vcmask 1048064
    %14 = vst.msk [vmem:[#allocation0] sm:$0x1] %vm13, %v12
    %s16 = sshllo.u32 0, 1
    %v18 = vld [vmem:[#allocation0] sm:%s16]
    %s19 = sshllo.u32 0, 1
    %20 = vst [vmem:[%s1] sm:%s19] %v18

// kernel: attention_forward.1
$region0: #{attention_forward.1}
  #allocation0 [shape = 'u32[]', space=smem, size = 0x4, offset = 0x4, fixed_abs, tag = 'smem constant byte address 0x4 - core index']
  #allocation1 [shape = 'u32[144,128]{1,0:T(1,128)}', space=vmem, size = 0x12000, scoped, tag = 'internal scratch']
  %s0 = inlined_call_operand.vmem [shape: bf16[1,16,128], index: 0, kind: input, shape index: {}]
  %s1 = inlined_call_operand.vmem [shape: bf16[128,384], index: 1, kind: input, shape index: {}]
  %s2 = inlined_call_operand.vmem [shape: f32[1,384], index: 2, kind: input, shape index: {}]
  %s3 = inlined_call_operand.vmem [shape: f32[1,16,128], index: 3, kind: input, shape index: {}]
  %s4 = inlined_call_operand.vmem [shape: f32[128,128], index: 4, kind: input, shape index: {}]
  %s5 = inlined_call_operand.vmem [shape: f32[128,128], index: 5, kind: input, shape index: {}]
  %s6 = inlined_call_operand.vmem [shape: f32[1,16,128], index: 6, kind: output, shape index: {}]
  %s7 = sld [smem:[#allocation0]]
  $region34: #{attention_forward.1} parent=0
    _
  %s9 = ssub.s32 1, %s7
  %s10 = scalar_select 0, %s9, %s7
  // Predicated region
  $region2: #{attention_forward.1} parent=0 // pred_check
    _
  $region3: #{attention_forward.1} parent=0 // pred_check_branch
    %12 = sbr.rel (0) target = $region5
  $region4: #{attention_forward.1} parent=0 // pred_region
    _
  $region5: #{attention_forward.1} parent=0 // pred_fallthru
    _
  // Predicated region
  $region6: #{attention_forward.1} parent=0 // pred_check
    _
  $region7: #{attention_forward.1} parent=0 // pred_check_branch
    %14 = sbr.rel (0) target = $region9
  $region8: #{attention_forward.1} parent=0 // pred_region
    _
  $region9: #{attention_forward.1} parent=0 // pred_fallthru
    _
  // Predicated region
  $region10: #{attention_forward.1} parent=0 // pred_check
    _
  $region11: #{attention_forward.1} parent=0 // pred_check_branch
    %16 = sbr.rel (0) target = $region13
  $region12: #{attention_forward.1} parent=0 // pred_region
    _
  $region13: #{attention_forward.1} parent=0 // pred_fallthru
    _
  // Predicated region
  $region14: #{attention_forward.1} parent=0 // pred_check
    _
  $region15: #{attention_forward.1} parent=0 // pred_check_branch
    %18 = sbr.rel (0) target = $region17
  $region16: #{attention_forward.1} parent=0 // pred_region
    _
  $region17: #{attention_forward.1} parent=0 // pred_fallthru
    _
  // Predicated region
  $region18: #{attention_forward.1} parent=0 // pred_check
    _
  $region19: #{attention_forward.1} parent=0 // pred_check_branch
    %20 = sbr.rel (0) target = $region21
  $region20: #{attention_forward.1} parent=0 // pred_region
    _
  $region21: #{attention_forward.1} parent=0 // pred_fallthru
    _
  // Predicated region
  $region22: #{attention_forward.1} parent=0 // pred_check
    _
  $region23: #{attention_forward.1} parent=0 // pred_check_branch
    %22 = sbr.rel (0) target = $region25
  $region24: #{attention_forward.1} parent=0 // pred_region
    _
  $region25: #{attention_forward.1} parent=0 // pred_fallthru
    _
  %v24 = vld [vmem:[%s0] sm:$0xf]
  %v25 = vld [vmem:[%s0 + $0x4] sm:$0xf]
  %v26 = vld [vmem:[%s3] sm:$0xff]
  %v27 = vld [vmem:[%s3 + $0x8] sm:$0xff]
  %v28 = vld [vmem:[%s4] sm:$0xff]
  %v29 = vld [vmem:[%s4 + $0x8] sm:$0xff]
  %v30 = vld [vmem:[%s4 + $0x10] sm:$0xff]
  %v31 = vld [vmem:[%s4 + $0x18] sm:$0xff]
  %v32 = vld [vmem:[%s4 + $0x20] sm:$0xff]
  %v33 = vld [vmem:[%s4 + $0x28] sm:$0xff]
  %v34 = vld [vmem:[%s4 + $0x30] sm:$0xff]
  %v35 = vld [vmem:[%s4 + $0x38] sm:$0xff]
  %v36 = vld [vmem:[%s4 + $0x40] sm:$0xff]
  %v37 = vld [vmem:[%s4 + $0x48] sm:$0xff]
  %v38 = vld [vmem:[%s4 + $0x50] sm:$0xff]
  %v39 = vld [vmem:[%s4 + $0x58] sm:$0xff]
  %v40 = vld [vmem:[%s4 + $0x60] sm:$0xff]
  %v41 = vld [vmem:[%s4 + $0x68] sm:$0xff]
  %v42 = vld [vmem:[%s4 + $0x70] sm:$0xff]
  %v43 = vld [vmem:[%s4 + $0x78] sm:$0xff]
  %v44 = vld [vmem:[%s5] sm:$0xff]
  %v45 = vld [vmem:[%s5 + $0x8] sm:$0xff]
  %v46 = vld [vmem:[%s5 + $0x10] sm:$0xff]
  %v47 = vld [vmem:[%s5 + $0x18] sm:$0xff]
  %v48 = vld [vmem:[%s5 + $0x20] sm:$0xff]
  %v49 = vld [vmem:[%s5 + $0x28] sm:$0xff]
  %v50 = vld [vmem:[%s5 + $0x30] sm:$0xff]
  %v51 = vld [vmem:[%s5 + $0x38] sm:$0xff]
  %v52 = vld [vmem:[%s5 + $0x40] sm:$0xff]
  %v53 = vld [vmem:[%s5 + $0x48] sm:$0xff]
  %v54 = vld [vmem:[%s5 + $0x50] sm:$0xff]
  %v55 = vld [vmem:[%s5 + $0x58] sm:$0xff]
  %v56 = vld [vmem:[%s5 + $0x60] sm:$0xff]
  %v57 = vld [vmem:[%s5 + $0x68] sm:$0xff]
  %v58 = vld [vmem:[%s5 + $0x70] sm:$0xff]
  %v59 = vld [vmem:[%s5 + $0x78] sm:$0xff]
  %v60 = vld [vmem:[%s1] sm:$0xff]
  %v61 = vld [vmem:[%s1 + $0x8] sm:$0xf]
  %v62 = vld [vmem:[%s1 + $0xc] sm:$0xff]
  %v63 = vld [vmem:[%s1 + $0x14] sm:$0xf]
  %v64 = vld [vmem:[%s1 + $0x18] sm:$0xff]
  %v65 = vld [vmem:[%s1 + $0x20] sm:$0xf]
  %v66 = vld [vmem:[%s1 + $0x24] sm:$0xff]
  %v67 = vld [vmem:[%s1 + $0x2c] sm:$0xf]
  %v68 = vld [vmem:[%s1 + $0x30] sm:$0xff]
  %v69 = vld [vmem:[%s1 + $0x38] sm:$0xf]
  %v70 = vld [vmem:[%s1 + $0x3c] sm:$0xff]
  %v71 = vld [vmem:[%s1 + $0x44] sm:$0xf]
  %v72 = vld [vmem:[%s1 + $0x48] sm:$0xff]
  %v73 = vld [vmem:[%s1 + $0x50] sm:$0xf]
  %v74 = vld [vmem:[%s1 + $0x54] sm:$0xff]
  %v75 = vld [vmem:[%s1 + $0x5c] sm:$0xf]
  %v76 = vld [vmem:[%s1 + $0x60] sm:$0xff]
  %v77 = vld [vmem:[%s1 + $0x68] sm:$0xf]
  %v78 = vld [vmem:[%s1 + $0x6c] sm:$0xff]
  %v79 = vld [vmem:[%s1 + $0x74] sm:$0xf]
  %v80 = vld [vmem:[%s1 + $0x78] sm:$0xff]
  %v81 = vld [vmem:[%s1 + $0x80] sm:$0xf]
  %v82 = vld [vmem:[%s1 + $0x84] sm:$0xff]
  %v83 = vld [vmem:[%s1 + $0x8c] sm:$0xf]
  %v84 = vld [vmem:[%s1 + $0x90] sm:$0xff]
  %v85 = vld [vmem:[%s1 + $0x98] sm:$0xf]
  %v86 = vld [vmem:[%s1 + $0x9c] sm:$0xff]
  %v87 = vld [vmem:[%s1 + $0xa4] sm:$0xf]
  %v88 = vld [vmem:[%s1 + $0xa8] sm:$0xff]
  %v89 = vld [vmem:[%s1 + $0xb0] sm:$0xf]
  %v90 = vld [vmem:[%s1 + $0xb4] sm:$0xff]
  %v91 = vld [vmem:[%s1 + $0xbc] sm:$0xf]
  %v92 = vld [vmem:[%s2] sm:$0x7]
  %v94 = vlaneseq
  %v95 = vshrl.u32 %v94, 7
  %v96 = vsub.s32 0, %v95
  %v97 = vrot.slane %v92, %v96
  %v98 = vlaneseq
  %v99 = vshrl.u32 %v98, 7
  %v100 = vsub.s32 1, %v99
  %v101 = vrot.slane %v92, %v100
  %v102 = vlaneseq
  %v103 = vshrl.u32 %v102, 7
  %v104 = vsub.s32 2, %v103
  %v105 = vrot.slane %v92, %v104
  %v111 = vunpack.c.l.b16 %v24
  %v112 = vunpack.c.l.b16 %v25
  %v113 = vpack.c.b16 %v112, %v111
  %v147 = vunpack.c.l.b16 %v60
  %v148 = vunpack.c.h.b16 %v60
  %v149 = vunpack.c.l.b16 %v61
  %v150 = vunpack.c.l.b16 %v62
  %v151 = vunpack.c.h.b16 %v62
  %v152 = vunpack.c.l.b16 %v63
  %v153 = vunpack.c.l.b16 %v64
  %v154 = vunpack.c.h.b16 %v64
  %v155 = vunpack.c.l.b16 %v65
  %v156 = vunpack.c.l.b16 %v66
  %v157 = vunpack.c.h.b16 %v66
  %v158 = vunpack.c.l.b16 %v67
  %v159 = vunpack.c.l.b16 %v68
  %v160 = vunpack.c.h.b16 %v68
  %v161 = vunpack.c.l.b16 %v69
  %v162 = vunpack.c.l.b16 %v70
  %v163 = vunpack.c.h.b16 %v70
  %v164 = vunpack.c.l.b16 %v71
  %v165 = vunpack.c.l.b16 %v72
  %v166 = vunpack.c.h.b16 %v72
  %v167 = vunpack.c.l.b16 %v73
  %v168 = vunpack.c.l.b16 %v74
  %v169 = vunpack.c.h.b16 %v74
  %v170 = vunpack.c.l.b16 %v75
  %v171 = vunpack.c.l.b16 %v76
  %v172 = vunpack.c.h.b16 %v76
  %v173 = vunpack.c.l.b16 %v77
  %v174 = vunpack.c.l.b16 %v78
  %v175 = vunpack.c.h.b16 %v78
  %v176 = vunpack.c.l.b16 %v79
  %v177 = vunpack.c.l.b16 %v80
  %v178 = vunpack.c.h.b16 %v80
  %v179 = vunpack.c.l.b16 %v81
  %v180 = vunpack.c.l.b16 %v82
  %v181 = vunpack.c.h.b16 %v82
  %v182 = vunpack.c.l.b16 %v83
  %v183 = vunpack.c.l.b16 %v84
  %v184 = vunpack.c.h.b16 %v84
  %v185 = vunpack.c.l.b16 %v85
  %v186 = vunpack.c.l.b16 %v86
  %v187 = vunpack.c.h.b16 %v86
  %v188 = vunpack.c.l.b16 %v87
  %v189 = vunpack.c.l.b16 %v88
  %v190 = vunpack.c.h.b16 %v88
  %v191 = vunpack.c.l.b16 %v89
  %v192 = vunpack.c.l.b16 %v90
  %v193 = vunpack.c.h.b16 %v90
  %v194 = vunpack.c.l.b16 %v91
  %v195 = vpack.c.b16 %v150, %v147
  %v196 = vpack.c.b16 %v151, %v148
  %v197 = vpack.c.b16 %v152, %v149
  %v198 = vpack.c.b16 %v156, %v153
  %v199 = vpack.c.b16 %v157, %v154
  %v200 = vpack.c.b16 %v158, %v155
  %v201 = vpack.c.b16 %v162, %v159
  %v202 = vpack.c.b16 %v163, %v160
  %v203 = vpack.c.b16 %v164, %v161
  %v204 = vpack.c.b16 %v168, %v165
  %v205 = vpack.c.b16 %v169, %v166
  %v206 = vpack.c.b16 %v170, %v167
  %v207 = vpack.c.b16 %v174, %v171
  %v208 = vpack.c.b16 %v175, %v172
  %v209 = vpack.c.b16 %v176, %v173
  %v210 = vpack.c.b16 %v180, %v177
  %v211 = vpack.c.b16 %v181, %v178
  %v212 = vpack.c.b16 %v182, %v179
  %v213 = vpack.c.b16 %v186, %v183
  %v214 = vpack.c.b16 %v187, %v184
  %v215 = vpack.c.b16 %v188, %v185
  %v216 = vpack.c.b16 %v192, %v189
  %v217 = vpack.c.b16 %v193, %v190
  %v218 = vpack.c.b16 %v194, %v191
  %243 = vmatprep.subr.bf16.mxu0 %v196
  %244 = vmatpush1.bf16.msra.mxu0 %v195
  %245 = vmatprep.subr.bf16.mxu0 %v199
  %246 = vmatpush1.bf16.msra.mxu0 %v198
  %247 = vmatprep.subr.bf16.mxu0 %v202
  %248 = vmatpush1.bf16.msra.mxu0 %v201
  %249 = vmatprep.subr.bf16.mxu0 %v205
  %250 = vmatpush1.bf16.msra.mxu0 %v204
  %251 = vmatprep.subr.bf16.mxu0 %v208
  %252 = vmatpush1.bf16.msra.mxu0 %v207
  %253 = vmatprep.subr.bf16.mxu0 %v211
  %254 = vmatpush1.bf16.msra.mxu0 %v210
  %255 = vmatprep.subr.bf16.mxu0 %v214
  %256 = vmatpush1.bf16.msra.mxu0 %v213
  %257 = vmatprep.subr.bf16.mxu0 %v217
  %258 = vmatpush1.bf16.msra.mxu0 %v216
  %259 = vmatprep.subr.bf16.mxu0 0
  %260 = vmatpush1.bf16.msra.mxu0 0
  %261 = vmatprep.subr.bf16.mxu0 0
  %262 = vmatpush1.bf16.msra.mxu0 0
  %263 = vmatprep.subr.bf16.mxu0 0
  %264 = vmatpush1.bf16.msra.mxu0 0
  %265 = vmatprep.subr.bf16.mxu0 0
  %266 = vmatpush1.bf16.msra.mxu0 0
  %267 = vmatprep.subr.bf16.mxu0 0
  %268 = vmatpush1.bf16.msra.mxu0 0
  %269 = vmatprep.subr.bf16.mxu0 0
  %270 = vmatpush1.bf16.msra.mxu0 0
  %271 = vmatprep.subr.bf16.mxu0 0
  %272 = vmatpush1.bf16.msra.mxu0 0
  %273 = vmatprep.subr.bf16.mxu0 0
  %274 = vmatpush1.bf16.msra.mxu0 0
  %275 = vmatprep.mubr.bf16.mxu0 0
  %276 = vmatmul.mubr.bf16.gmra.mrb[0].mxu0 %v113
  %v277 = vpop.f32.mrb[0].mxu0
  %v278 = vadd.f32 %v97, %v277
  %v279 = vpop.f32.mrb[0].mxu0
  %v280 = vadd.f32 %v101, %v279
  %v281 = vpop.f32.mrb[0].mxu0
  %v282 = vadd.f32 %v97, %v281
  %v283 = vpop.f32.mrb[0].mxu0
  %v284 = vadd.f32 %v101, %v283
  %285 = vdwg.mxu0
  %286 = vmatprep.subr.bf16.mxu0 0
  %287 = vmatpush1.bf16.msra.mxu0 %v197
  %288 = vmatprep.subr.bf16.mxu0 0
  %289 = vmatpush1.bf16.msra.mxu0 %v200
  %290 = vmatprep.subr.bf16.mxu0 0
  %291 = vmatpush1.bf16.msra.mxu0 %v203
  %292 = vmatprep.subr.bf16.mxu0 0
  %293 = vmatpush1.bf16.msra.mxu0 %v206
  %294 = vmatprep.subr.bf16.mxu0 0
  %295 = vmatpush1.bf16.msra.mxu0 %v209
  %296 = vmatprep.subr.bf16.mxu0 0
  %297 = vmatpush1.bf16.msra.mxu0 %v212
  %298 = vmatprep.subr.bf16.mxu0 0
  %299 = vmatpush1.bf16.msra.mxu0 %v215
  %300 = vmatprep.subr.bf16.mxu0 0
  %301 = vmatpush1.bf16.msra.mxu0 %v218
  %302 = vmatprep.subr.bf16.mxu0 0
  %303 = vmatpush1.bf16.msra.mxu0 0
  %304 = vmatprep.subr.bf16.mxu0 0
  %305 = vmatpush1.bf16.msra.mxu0 0
  %306 = vmatprep.subr.bf16.mxu0 0
  %307 = vmatpush1.bf16.msra.mxu0 0
  %308 = vmatprep.subr.bf16.mxu0 0
  %309 = vmatpush1.bf16.msra.mxu0 0
  %310 = vmatprep.subr.bf16.mxu0 0
  %311 = vmatpush1.bf16.msra.mxu0 0
  %312 = vmatprep.subr.bf16.mxu0 0
  %313 = vmatpush1.bf16.msra.mxu0 0
  %314 = vmatprep.subr.bf16.mxu0 0
  %315 = vmatpush1.bf16.msra.mxu0 0
  %316 = vmatprep.subr.bf16.mxu0 0
  %317 = vmatpush1.bf16.msra.mxu0 0
  %318 = vmatprep.mubr.bf16.mxu0 0
  %319 = vmatmul.mubr.bf16.gmra.mrb[0].mxu0 %v113
  %v320 = vpop.f32.mrb[0].mxu0
  %v321 = vadd.f32 %v105, %v320
  %v322 = vpop.f32.mrb[0].mxu0
  %v323 = vpop.f32.mrb[0].mxu0
  %v324 = vadd.f32 %v105, %v323
  %v325 = vpop.f32.mrb[0].mxu0
  %326 = vdwg.mxu0
  %v327 = vmul.f32 %v278, %v278
  %v328 = vmul.f32 %v282, %v282
  %329 = vmatprep.subr.mxu0 0.0
  %330 = vmatpush1.msra.mxu0 %v44
  %331 = vmatprep.subr.mxu0 0.0
  %332 = vmatpush1.msra.mxu0 %v45
  %333 = vmatprep.subr.mxu0 0.0
  %334 = vmatpush1.msra.mxu0 %v46
  %335 = vmatprep.subr.mxu0 0.0
  %336 = vmatpush1.msra.mxu0 %v47
  %337 = vmatprep.subr.mxu0 0.0
  %338 = vmatpush1.msra.mxu0 %v48
  %339 = vmatprep.subr.mxu0 0.0
  %340 = vmatpush1.msra.mxu0 %v49
  %341 = vmatprep.subr.mxu0 0.0
  %342 = vmatpush1.msra.mxu0 %v50
  %343 = vmatprep.subr.mxu0 0.0
  %344 = vmatpush1.msra.mxu0 %v51
  %345 = vmatprep.subr.mxu0 0.0
  %346 = vmatpush1.msra.mxu0 %v52
  %347 = vmatprep.subr.mxu0 0.0
  %348 = vmatpush1.msra.mxu0 %v53
  %349 = vmatprep.subr.mxu0 0.0
  %350 = vmatpush1.msra.mxu0 %v54
  %351 = vmatprep.subr.mxu0 0.0
  %352 = vmatpush1.msra.mxu0 %v55
  %353 = vmatprep.subr.mxu0 0.0
  %354 = vmatpush1.msra.mxu0 %v56
  %355 = vmatprep.subr.mxu0 0.0
  %356 = vmatpush1.msra.mxu0 %v57
  %357 = vmatprep.subr.mxu0 0.0
  %358 = vmatpush1.msra.mxu0 %v58
  %359 = vmatprep.subr.mxu0 0.0
  %360 = vmatpush1.msra.mxu0 %v59
  %361 = vmatprep.subr.mxu0 0.0
  %362 = vmatpush1.msra.mxu0 0.0
  %363 = vmatprep.subr.mxu0 0.0
  %364 = vmatpush1.msra.mxu0 0.0
  %365 = vmatprep.subr.mxu0 0.0
  %366 = vmatpush1.msra.mxu0 0.0
  %367 = vmatprep.subr.mxu0 0.0
  %368 = vmatpush1.msra.mxu0 0.0
  %369 = vmatprep.subr.mxu0 0.0
  %370 = vmatpush1.msra.mxu0 0.0
  %371 = vmatprep.subr.mxu0 0.0
  %372 = vmatpush1.msra.mxu0 0.0
  %373 = vmatprep.subr.mxu0 0.0
  %374 = vmatpush1.msra.mxu0 0.0
  %375 = vmatprep.subr.mxu0 0.0
  %376 = vmatpush1.msra.mxu0 0.0
  %377 = vmatprep.subr.mxu0 0.0
  %378 = vmatpush1.msra.mxu0 0.0
  %379 = vmatprep.subr.mxu0 0.0
  %380 = vmatpush1.msra.mxu0 0.0
  %381 = vmatprep.subr.mxu0 0.0
  %382 = vmatpush1.msra.mxu0 0.0
  %383 = vmatprep.subr.mxu0 0.0
  %384 = vmatpush1.msra.mxu0 0.0
  %385 = vmatprep.subr.mxu0 0.0
  %386 = vmatpush1.msra.mxu0 0.0
  %387 = vmatprep.subr.mxu0 0.0
  %388 = vmatpush1.msra.mxu0 0.0
  %389 = vmatprep.subr.mxu0 0.0
  %390 = vmatpush1.msra.mxu0 0.0
  %391 = vmatprep.subr.mxu0 0.0
  %392 = vmatpush1.msra.mxu0 0.0
  %393 = vmatprep.mubr.f32.mxu0 0.0
  %394 = vmatmul.mubr.f32.gmra.mrb[0].mxu0 %v327
  %v395 = vpop.f32.mrb[0].mxu0
  %v396 = vadd.f32 0.0, %v395
  %v397 = vpop.f32.mrb[0].mxu0
  %398 = vmatprep.mubr.f32.mxu0 0.0
  %399 = vmatmul.mubr.f32.gmra.mrb[0].mxu0 %v328
  %v400 = vpop.f32.mrb[0].mxu0
  %v401 = vadd.f32 0.0, %v400
  %v402 = vpop.f32.mrb[0].mxu0
  %403 = vdwg.mxu0
  %v404 = vmul.f32 %v280, %v280
  %v405 = vmul.f32 %v284, %v284
  %406 = vmatprep.subr.mxu0 0.0
  %407 = vmatpush1.msra.mxu0 %v44
  %408 = vmatprep.subr.mxu0 0.0
  %409 = vmatpush1.msra.mxu0 %v45
  %410 = vmatprep.subr.mxu0 0.0
  %411 = vmatpush1.msra.mxu0 %v46
  %412 = vmatprep.subr.mxu0 0.0
  %413 = vmatpush1.msra.mxu0 %v47
  %414 = vmatprep.subr.mxu0 0.0
  %415 = vmatpush1.msra.mxu0 %v48
  %416 = vmatprep.subr.mxu0 0.0
  %417 = vmatpush1.msra.mxu0 %v49
  %418 = vmatprep.subr.mxu0 0.0
  %419 = vmatpush1.msra.mxu0 %v50
  %420 = vmatprep.subr.mxu0 0.0
  %421 = vmatpush1.msra.mxu0 %v51
  %422 = vmatprep.subr.mxu0 0.0
  %423 = vmatpush1.msra.mxu0 %v52
  %424 = vmatprep.subr.mxu0 0.0
  %425 = vmatpush1.msra.mxu0 %v53
  %426 = vmatprep.subr.mxu0 0.0
  %427 = vmatpush1.msra.mxu0 %v54
  %428 = vmatprep.subr.mxu0 0.0
  %429 = vmatpush1.msra.mxu0 %v55
  %430 = vmatprep.subr.mxu0 0.0
  %431 = vmatpush1.msra.mxu0 %v56
  %432 = vmatprep.subr.mxu0 0.0
  %433 = vmatpush1.msra.mxu0 %v57
  %434 = vmatprep.subr.mxu0 0.0
  %435 = vmatpush1.msra.mxu0 %v58
  %436 = vmatprep.subr.mxu0 0.0
  %437 = vmatpush1.msra.mxu0 %v59
  %438 = vmatprep.subr.mxu0 0.0
  %439 = vmatpush1.msra.mxu0 0.0
  %440 = vmatprep.subr.mxu0 0.0
  %441 = vmatpush1.msra.mxu0 0.0
  %442 = vmatprep.subr.mxu0 0.0
  %443 = vmatpush1.msra.mxu0 0.0
  %444 = vmatprep.subr.mxu0 0.0
  %445 = vmatpush1.msra.mxu0 0.0
  %446 = vmatprep.subr.mxu0 0.0
  %447 = vmatpush1.msra.mxu0 0.0
  %448 = vmatprep.subr.mxu0 0.0
  %449 = vmatpush1.msra.mxu0 0.0
  %450 = vmatprep.subr.mxu0 0.0
  %451 = vmatpush1.msra.mxu0 0.0
  %452 = vmatprep.subr.mxu0 0.0
  %453 = vmatpush1.msra.mxu0 0.0
  %454 = vmatprep.subr.mxu0 0.0
  %455 = vmatpush1.msra.mxu0 0.0
  %456 = vmatprep.subr.mxu0 0.0
  %457 = vmatpush1.msra.mxu0 0.0
  %458 = vmatprep.subr.mxu0 0.0
  %459 = vmatpush1.msra.mxu0 0.0
  %460 = vmatprep.subr.mxu0 0.0
  %461 = vmatpush1.msra.mxu0 0.0
  %462 = vmatprep.subr.mxu0 0.0
  %463 = vmatpush1.msra.mxu0 0.0
  %464 = vmatprep.subr.mxu0 0.0
  %465 = vmatpush1.msra.mxu0 0.0
  %466 = vmatprep.subr.mxu0 0.0
  %467 = vmatpush1.msra.mxu0 0.0
  %468 = vmatprep.subr.mxu0 0.0
  %469 = vmatpush1.msra.mxu0 0.0
  %470 = vmatprep.mubr.f32.mxu0 0.0
  %471 = vmatmul.mubr.f32.gmra.mrb[0].mxu0 %v404
  %v472 = vpop.f32.mrb[0].mxu0
  %v473 = vadd.f32 0.0, %v472
  %v474 = vpop.f32.mrb[0].mxu0
  %475 = vmatprep.mubr.f32.mxu0 0.0
  %476 = vmatmul.mubr.f32.gmra.mrb[0].mxu0 %v405
  %v477 = vpop.f32.mrb[0].mxu0
  %v478 = vadd.f32 0.0, %v477
  %v479 = vpop.f32.mrb[0].mxu0
  %480 = vdwg.mxu0
  %v481 = vmax.f32 %v396, 1e-24
  %v482 = vmax.f32 %v401, 1e-24
  %v483 = vrsqrt.pop %v481
  %v484 = vrsqrt.pop %v482
  %v485 = vmul.f32 %v278, %v483
  %v486 = vmul.f32 %v282, %v484
  %v487 = vmax.f32 %v473, 1e-24
  %v488 = vmax.f32 %v478, 1e-24
  %v489 = vrsqrt.pop %v487
  %v490 = vrsqrt.pop %v488
  %v491 = vmul.f32 %v280, %v489
  %v492 = vmul.f32 %v284, %v490
  %v493 = vmul.f32 %v321, %v26
  %v494 = vmul.f32 %v324, %v27
  %v495 = vmul.f32 %v491, %v28
  %v496 = vmul.f32 %v492, %v29
  %v497 = vmul.f32 %v491, %v30
  %v498 = vmul.f32 %v492, %v31
  %v499 = vmul.f32 %v491, %v32
  %v500 = vmul.f32 %v492, %v33
  %v501 = vmul.f32 %v491, %v34
  %v502 = vmul.f32 %v492, %v35
  %v503 = vmul.f32 %v491, %v36
  %v504 = vmul.f32 %v492, %v37
  %v505 = vmul.f32 %v491, %v38
  %v506 = vmul.f32 %v492, %v39
  %v507 = vmul.f32 %v491, %v40
  %v508 = vmul.f32 %v492, %v41
  %v509 = vmul.f32 %v491, %v42
  %v510 = vmul.f32 %v492, %v43
  %v511 = vmul.f32 %v493, %v28
  %v512 = vmul.f32 %v494, %v29
  %v513 = vmul.f32 %v493, %v30
  %v514 = vmul.f32 %v494, %v31
  %v515 = vmul.f32 %v493, %v32
  %v516 = vmul.f32 %v494, %v33
  %v517 = vmul.f32 %v493, %v34
  %v518 = vmul.f32 %v494, %v35
  %v519 = vmul.f32 %v493, %v36
  %v520 = vmul.f32 %v494, %v37
  %v521 = vmul.f32 %v493, %v38
  %v522 = vmul.f32 %v494, %v39
  %v523 = vmul.f32 %v493, %v40
  %v524 = vmul.f32 %v494, %v41
  %v525 = vmul.f32 %v493, %v42
  %v526 = vmul.f32 %v494, %v43
  %527 = vmatprep.subr.mxu0 0.0
  %528 = vmatpush1.xpose.msra.mxu0 %v495
  %529 = vmatprep.subr.mxu0 0.0
  %530 = vmatpush1.xpose.msra.mxu0 %v496
  %531 = vmatprep.subr.mxu0 0.0
  %532 = vmatpush1.xpose.msra.mxu0 %v497
  %533 = vmatprep.subr.mxu0 0.0
  %534 = vmatpush1.xpose.msra.mxu0 %v498
  %535 = vmatprep.subr.mxu0 0.0
  %536 = vmatpush1.xpose.msra.mxu0 %v499
  %537 = vmatprep.subr.mxu0 0.0
  %538 = vmatpush1.xpose.msra.mxu0 %v500
  %539 = vmatprep.subr.mxu0 0.0
  %540 = vmatpush1.xpose.msra.mxu0 %v501
  %541 = vmatprep.subr.mxu0 0.0
  %542 = vmatpush1.xpose.msra.mxu0 %v502
  %543 = vmatprep.subr.mxu0 0.0
  %544 = vmatpush1.xpose.msra.mxu0 %v503
  %545 = vmatprep.subr.mxu0 0.0
  %546 = vmatpush1.xpose.msra.mxu0 %v504
  %547 = vmatprep.subr.mxu0 0.0
  %548 = vmatpush1.xpose.msra.mxu0 %v505
  %549 = vmatprep.subr.mxu0 0.0
  %550 = vmatpush1.xpose.msra.mxu0 %v506
  %551 = vmatprep.subr.mxu0 0.0
  %552 = vmatpush1.xpose.msra.mxu0 %v507
  %553 = vmatprep.subr.mxu0 0.0
  %554 = vmatpush1.xpose.msra.mxu0 %v508
  %555 = vmatprep.subr.mxu0 0.0
  %556 = vmatpush1.xpose.msra.mxu0 %v509
  %557 = vmatprep.subr.mxu0 0.0
  %558 = vmatpush1.xpose.msra.mxu0 %v510
  %559 = vmatprep.subr.mxu0 0.0
  %560 = vmatpush1.xpose.msra.mxu0 0.0
  %561 = vmatprep.subr.mxu0 0.0
  %562 = vmatpush1.xpose.msra.mxu0 0.0
  %563 = vmatprep.subr.mxu0 0.0
  %564 = vmatpush1.xpose.msra.mxu0 0.0
  %565 = vmatprep.subr.mxu0 0.0
  %566 = vmatpush1.xpose.msra.mxu0 0.0
  %567 = vmatprep.subr.mxu0 0.0
  %568 = vmatpush1.xpose.msra.mxu0 0.0
  %569 = vmatprep.subr.mxu0 0.0
  %570 = vmatpush1.xpose.msra.mxu0 0.0
  %571 = vmatprep.subr.mxu0 0.0
  %572 = vmatpush1.xpose.msra.mxu0 0.0
  %573 = vmatprep.subr.mxu0 0.0
  %574 = vmatpush1.xpose.msra.mxu0 0.0
  %575 = vmatprep.subr.mxu0 0.0
  %576 = vmatpush1.xpose.msra.mxu0 0.0
  %577 = vmatprep.subr.mxu0 0.0
  %578 = vmatpush1.xpose.msra.mxu0 0.0
  %579 = vmatprep.subr.mxu0 0.0
  %580 = vmatpush1.xpose.msra.mxu0 0.0
  %581 = vmatprep.subr.mxu0 0.0
  %582 = vmatpush1.xpose.msra.mxu0 0.0
  %583 = vmatprep.subr.mxu0 0.0
  %584 = vmatpush1.xpose.msra.mxu0 0.0
  %585 = vmatprep.subr.mxu0 0.0
  %586 = vmatpush1.xpose.msra.mxu0 0.0
  %587 = vmatprep.subr.mxu0 0.0
  %588 = vmatpush1.xpose.msra.mxu0 0.0
  %589 = vmatprep.subr.mxu0 0.0
  %590 = vmatpush1.xpose.msra.mxu0 0.0
  %591 = vmatprep.mubr.f32.mxu0 0.0
  %592 = vmatmul.mubr.f32.gmra.mrb[0].mxu0 %v485
  %v593 = vpop.f32.mrb[0].mxu0
  %v594 = vadd.f32 0.0, %v593
  %v595 = vpop.f32.mrb[0].mxu0
  %596 = vmatprep.mubr.f32.mxu0 0.0
  %597 = vmatmul.mubr.f32.gmra.mrb[0].mxu0 %v486
  %v598 = vpop.f32.mrb[0].mxu0
  %v599 = vadd.f32 0.0, %v598
  %v600 = vpop.f32.mrb[0].mxu0
  %601 = vdwg.mxu0
  %v602 = vand.u32 2147483647, %v594
  %v603 = vand.u32 2147483647, %v599
  %v604 = vmin.f32 %v602, 1.0
  %v605 = vmin.f32 %v603, 1.0
  %v606 = vmul.f32 %v604, -0.0004018634
  %v607 = vmul.f32 %v605, -0.0004018634
  %v608 = vadd.f32 %v606, 0.0021231556
  %v609 = vadd.f32 %v607, 0.0021231556
  %v610 = vmul.f32 %v608, %v604
  %v611 = vmul.f32 %v609, %v605
  %v612 = vadd.f32 %v610, -0.005439319
  %v613 = vadd.f32 %v611, -0.005439319
  %v614 = vmul.f32 %v612, %v604
  %v615 = vmul.f32 %v613, %v605
  %v616 = vadd.f32 %v614, 0.0098331915
  %v617 = vadd.f32 %v615, 0.0098331915
  %v618 = vmul.f32 %v616, %v604
  %v619 = vmul.f32 %v617, %v605
  %v620 = vadd.f32 %v618, -0.015970977
  %v621 = vadd.f32 %v619, -0.015970977
  %v622 = vmul.f32 %v620, %v604
  %v623 = vmul.f32 %v621, %v605
  %v624 = vadd.f32 %v622, 0.028322892
  %v625 = vadd.f32 %v623, 0.028322892
  %v626 = vmul.f32 %v624, %v604
  %v627 = vmul.f32 %v625, %v605
  %v628 = vadd.f32 %v626, -0.06830892
  %v629 = vadd.f32 %v627, -0.06830892
  %v630 = vmul.f32 %v628, %v604
  %v631 = vmul.f32 %v629, %v605
  %v632 = vadd.f32 %v630, 0.5
  %v633 = vadd.f32 %v631, 0.5
  %v634 = vsub.f32 1.0, %v604
  %v635 = vsub.f32 1.0, %v605
  %v636 = vrsqrt.pop %v634
  %v637 = vmul.f32 %v634, %v636
  %vm638 = vcmp.eq.f32.partialorder %v634, inf
  %v639 = vsel %vm638, %v634, %v637
  %vm640 = vcmp.eq.f32.partialorder %v634, 0.0
  %v641 = vand.u32 %v634, 2147483648
  %v642 = vsel %vm640, %v641, %v639
  %v643 = vrsqrt.pop %v635
  %v644 = vmul.f32 %v635, %v643
  %vm645 = vcmp.eq.f32.partialorder %v635, inf
  %v646 = vsel %vm645, %v635, %v644
  %vm647 = vcmp.eq.f32.partialorder %v635, 0.0
  %v648 = vand.u32 %v635, 2147483648
  %v649 = vsel %vm647, %v648, %v646
  %v650 = vmul.f32 %v632, %v642
  %v651 = vmul.f32 %v633, %v649
  %vm652 = vcmp.lt.f32.partialorder %v594, 0.0
  %vm653 = vcmp.lt.f32.partialorder %v599, 0.0
  %v654 = vsub.f32 1.0, %v650
  %v655 = vsub.f32 1.0, %v651
  %v656 = vsel %vm652, %v650, %v654
  %v657 = vsel %vm653, %v651, %v655
  %v658 = vmul.f32 %v656, %v656
  %v659 = vmul.f32 %v657, %v657
  %v660 = vmul.f32 %v658, %v658
  %v661 = vmul.f32 %v659, %v659
  %v662 = vmul.f32 %v660, %v660
  %v663 = vmul.f32 %v661, %v661
  %v664 = vmul.f32 %v656, %v662
  %v665 = vmul.f32 %v657, %v663
  %666 = vmatprep.subr.mxu0 0.0
  %667 = vmatpush1.msra.mxu0 %v511
  %668 = vmatprep.subr.mxu0 0.0
  %669 = vmatpush1.msra.mxu0 %v512
  %670 = vmatprep.subr.mxu0 0.0
  %671 = vmatpush1.msra.mxu0 %v513
  %672 = vmatprep.subr.mxu0 0.0
  %673 = vmatpush1.msra.mxu0 %v514
  %674 = vmatprep.subr.mxu0 0.0
  %675 = vmatpush1.msra.mxu0 %v515
  %676 = vmatprep.subr.mxu0 0.0
  %677 = vmatpush1.msra.mxu0 %v516
  %678 = vmatprep.subr.mxu0 0.0
  %679 = vmatpush1.msra.mxu0 %v517
  %680 = vmatprep.subr.mxu0 0.0
  %681 = vmatpush1.msra.mxu0 %v518
  %682 = vmatprep.subr.mxu0 0.0
  %683 = vmatpush1.msra.mxu0 %v519
  %684 = vmatprep.subr.mxu0 0.0
  %685 = vmatpush1.msra.mxu0 %v520
  %686 = vmatprep.subr.mxu0 0.0
  %687 = vmatpush1.msra.mxu0 %v521
  %688 = vmatprep.subr.mxu0 0.0
  %689 = vmatpush1.msra.mxu0 %v522
  %690 = vmatprep.subr.mxu0 0.0
  %691 = vmatpush1.msra.mxu0 %v523
  %692 = vmatprep.subr.mxu0 0.0
  %693 = vmatpush1.msra.mxu0 %v524
  %694 = vmatprep.subr.mxu0 0.0
  %695 = vmatpush1.msra.mxu0 %v525
  %696 = vmatprep.subr.mxu0 0.0
  %697 = vmatpush1.msra.mxu0 %v526
  %698 = vmatprep.subr.mxu0 0.0
  %699 = vmatpush1.msra.mxu0 0.0
  %700 = vmatprep.subr.mxu0 0.0
  %701 = vmatpush1.msra.mxu0 0.0
  %702 = vmatprep.subr.mxu0 0.0
  %703 = vmatpush1.msra.mxu0 0.0
  %704 = vmatprep.subr.mxu0 0.0
  %705 = vmatpush1.msra.mxu0 0.0
  %706 = vmatprep.subr.mxu0 0.0
  %707 = vmatpush1.msra.mxu0 0.0
  %708 = vmatprep.subr.mxu0 0.0
  %709 = vmatpush1.msra.mxu0 0.0
  %710 = vmatprep.subr.mxu0 0.0
  %711 = vmatpush1.msra.mxu0 0.0
  %712 = vmatprep.subr.mxu0 0.0
  %713 = vmatpush1.msra.mxu0 0.0
  %714 = vmatprep.subr.mxu0 0.0
  %715 = vmatpush1.msra.mxu0 0.0
  %716 = vmatprep.subr.mxu0 0.0
  %717 = vmatpush1.msra.mxu0 0.0
  %718 = vmatprep.subr.mxu0 0.0
  %719 = vmatpush1.msra.mxu0 0.0
  %720 = vmatprep.subr.mxu0 0.0
  %721 = vmatpush1.msra.mxu0 0.0
  %722 = vmatprep.subr.mxu0 0.0
  %723 = vmatpush1.msra.mxu0 0.0
  %724 = vmatprep.subr.mxu0 0.0
  %725 = vmatpush1.msra.mxu0 0.0
  %726 = vmatprep.subr.mxu0 0.0
  %727 = vmatpush1.msra.mxu0 0.0
  %728 = vmatprep.subr.mxu0 0.0
  %729 = vmatpush1.msra.mxu0 0.0
  %730 = vmatprep.mubr.f32.mxu0 0.0
  %731 = vmatmul.mubr.f32.gmra.mrb[0].mxu0 %v664
  %v732 = vpop.f32.mrb[0].mxu0
  %v733 = vadd.f32 0.0, %v732
  %v734 = vpop.f32.mrb[0].mxu0
  %735 = vmatprep.mubr.f32.mxu0 0.0
  %736 = vmatmul.mubr.f32.gmra.mrb[0].mxu0 %v665
  %v737 = vpop.f32.mrb[0].mxu0
  %v738 = vadd.f32 0.0, %v737
  %v739 = vpop.f32.mrb[0].mxu0
  %740 = vdwg.mxu0
  %v741 = vmul.f32 %v733, %v733
  %v742 = vmul.f32 %v738, %v738
  %743 = vmatprep.subr.mxu0 0.0
  %744 = vmatpush1.msra.mxu0 %v44
  %745 = vmatprep.subr.mxu0 0.0
  %746 = vmatpush1.msra.mxu0 %v45
  %747 = vmatprep.subr.mxu0 0.0
  %748 = vmatpush1.msra.mxu0 %v46
  %749 = vmatprep.subr.mxu0 0.0
  %750 = vmatpush1.msra.mxu0 %v47
  %751 = vmatprep.subr.mxu0 0.0
  %752 = vmatpush1.msra.mxu0 %v48
  %753 = vmatprep.subr.mxu0 0.0
  %754 = vmatpush1.msra.mxu0 %v49
  %755 = vmatprep.subr.mxu0 0.0
  %756 = vmatpush1.msra.mxu0 %v50
  %757 = vmatprep.subr.mxu0 0.0
  %758 = vmatpush1.msra.mxu0 %v51
  %759 = vmatprep.subr.mxu0 0.0
  %760 = vmatpush1.msra.mxu0 %v52
  %761 = vmatprep.subr.mxu0 0.0
  %762 = vmatpush1.msra.mxu0 %v53
  %763 = vmatprep.subr.mxu0 0.0
  %764 = vmatpush1.msra.mxu0 %v54
  %765 = vmatprep.subr.mxu0 0.0
  %766 = vmatpush1.msra.mxu0 %v55
  %767 = vmatprep.subr.mxu0 0.0
  %768 = vmatpush1.msra.mxu0 %v56
  %769 = vmatprep.subr.mxu0 0.0
  %770 = vmatpush1.msra.mxu0 %v57
  %771 = vmatprep.subr.mxu0 0.0
  %772 = vmatpush1.msra.mxu0 %v58
  %773 = vmatprep.subr.mxu0 0.0
  %774 = vmatpush1.msra.mxu0 %v59
  %775 = vmatprep.subr.mxu0 0.0
  %776 = vmatpush1.msra.mxu0 0.0
  %777 = vmatprep.subr.mxu0 0.0
  %778 = vmatpush1.msra.mxu0 0.0
  %779 = vmatprep.subr.mxu0 0.0
  %780 = vmatpush1.msra.mxu0 0.0
  %781 = vmatprep.subr.mxu0 0.0
  %782 = vmatpush1.msra.mxu0 0.0
  %783 = vmatprep.subr.mxu0 0.0
  %784 = vmatpush1.msra.mxu0 0.0
  %785 = vmatprep.subr.mxu0 0.0
  %786 = vmatpush1.msra.mxu0 0.0
  %787 = vmatprep.subr.mxu0 0.0
  %788 = vmatpush1.msra.mxu0 0.0
  %789 = vmatprep.subr.mxu0 0.0
  %790 = vmatpush1.msra.mxu0 0.0
  %791 = vmatprep.subr.mxu0 0.0
  %792 = vmatpush1.msra.mxu0 0.0
  %793 = vmatprep.subr.mxu0 0.0
  %794 = vmatpush1.msra.mxu0 0.0
  %795 = vmatprep.subr.mxu0 0.0
  %796 = vmatpush1.msra.mxu0 0.0
  %797 = vmatprep.subr.mxu0 0.0
  %798 = vmatpush1.msra.mxu0 0.0
  %799 = vmatprep.subr.mxu0 0.0
  %800 = vmatpush1.msra.mxu0 0.0
  %801 = vmatprep.subr.mxu0 0.0
  %802 = vmatpush1.msra.mxu0 0.0
  %803 = vmatprep.subr.mxu0 0.0
  %804 = vmatpush1.msra.mxu0 0.0
  %805 = vmatprep.subr.mxu0 0.0
  %806 = vmatpush1.msra.mxu0 0.0
  %807 = vmatprep.mubr.f32.mxu0 0.0
  %808 = vmatmul.mubr.f32.gmra.mrb[0].mxu0 %v741
  %v809 = vpop.f32.mrb[0].mxu0
  %v810 = vadd.f32 0.0, %v809
  %v811 = vpop.f32.mrb[0].mxu0
  %812 = vmatprep.mubr.f32.mxu0 0.0
  %813 = vmatmul.mubr.f32.gmra.mrb[0].mxu0 %v742
  %v814 = vpop.f32.mrb[0].mxu0
  %v815 = vadd.f32 0.0, %v814
  %v816 = vpop.f32.mrb[0].mxu0
  %817 = vdwg.mxu0
  %v818 = vmax.f32 %v810, 1e-24
  %v819 = vmax.f32 %v815, 1e-24
  %v820 = vrsqrt.pop %v818
  %v821 = vrsqrt.pop %v819
  %v822 = vmul.f32 %v733, %v820
  %v823 = vmul.f32 %v738, %v821
  %v824 = vmul.f32 %v822, %v26
  %v825 = vmul.f32 %v823, %v27
  %826 = vst [vmem:[%s6] sm:$0xff] %v824
  %827 = vst [vmem:[%s6 + $0x8] sm:$0xff] %v825
  // Predicated region
  $region26: #{attention_forward.1} parent=0 // pred_check
    _
  $region27: #{attention_forward.1} parent=0 // pred_check_branch
    %829 = sbr.rel (0) target = $region29
  $region28: #{attention_forward.1} parent=0 // pred_region
    _
  $region29: #{attention_forward.1} parent=0 // pred_fallthru
    _
  // Predicated region
  $region30: #{attention_forward.1} parent=0 // pred_check
    _
  $region31: #{attention_forward.1} parent=0 // pred_check_branch
    %831 = sbr.rel (0) target = $region33
  $region32: #{attention_forward.1} parent=0 // pred_region
    _
  $region33: #{attention_forward.1} parent=0 // pred_fallthru
    _

</llo_original>
